<compile_context>
chip_gen: v7x
topology: tpu7x:2x2x1
jax: 0.10.0
libtpu: 0.0.40
codegen_flags: <defaults>
</compile_context>

<pallas_src>
import jax
import jax.numpy as jnp
from jax.experimental import pallas as pl
from jax.experimental.pallas import tpu as pltpu


# ---------------------------------------------------------------------------
# Kernels
# ---------------------------------------------------------------------------

def _softmax_scale_row_kernel(x_smem, row_ref, o_ref):
    """1-D path: o[0, c] = softmax_over_c( x * w[c] ).

    x_smem: (1,) f32 in SMEM (true scalar), row_ref: (1, C) in VMEM, o_ref: (1, C).
    Softmax axis c sits on the 128-lane axis.
    """
    s = x_smem[0]                                          # scalar load from SMEM
    logits = row_ref[...] * s                              # VPU scalar broadcast
    m = jnp.max(logits, axis=-1, keepdims=True)            # lane reduce (XLU)
    e = jnp.exp(logits - m)                                # arg <= 0 -> no overflow (EUP)
    z = jnp.sum(e, axis=-1, keepdims=True)                 # lane reduce (XLU)
    o_ref[...] = e * pl.reciprocal(z)                      # exact 1/z


def _softmax_outer_kernel(col_ref, row_ref, o_ref):
    """Batched path: o[r, c] = softmax_over_c( col[r] * row[c] ).

    col_ref: (R, 1), row_ref: (1, C), o_ref: (R, C), all VMEM resident.
    The softmax axis (c) is on the 128-lane axis; the multiply is a VPU broadcast
    outer product, the reductions are lane reduces.
    """
    logits = col_ref[...] * row_ref[...]                   # (R, C) VPU outer product
    m = jnp.max(logits, axis=-1, keepdims=True)            # (R, 1) lane reduce
    e = jnp.exp(logits - m)                                # arg <= 0 -> no overflow
    z = jnp.sum(e, axis=-1, keepdims=True)                 # (R, 1) lane reduce
    o_ref[...] = e * pl.reciprocal(z)


# ---------------------------------------------------------------------------
# pallas_call wrappers (no grid: single invocation, whole problem in VMEM)
# ---------------------------------------------------------------------------

def _padded_f32_bytes(rows, cols):
    """f32 VMEM footprint of a (rows, cols) array padded to (8, 128) tiles."""
    r_p = -(-rows // 8) * 8
    c_p = -(-cols // 128) * 128
    return r_p * c_p * 4


def _vmem_limit(*shapes):
    need = sum(_padded_f32_bytes(r, c) for (r, c) in shapes)
    # Generous headroom, never below the v6e/v7x scoped default, never above v7x physical.
    return int(min(max(2 * need + (1 << 20), 32 << 20), 64 << 20))


def _softmax_row(x_scalar, row):
    """x_scalar: (1,) f32, row: (1, C) f32 -> (1, C) softmax over C."""
    C = row.shape[1]
    return pl.pallas_call(
        _softmax_scale_row_kernel,
        out_shape=jax.ShapeDtypeStruct((1, C), jnp.float32),
        in_specs=[
            pl.BlockSpec(memory_space=pltpu.MemorySpace.SMEM),   # scalar x
            pl.BlockSpec(memory_space=pltpu.MemorySpace.VMEM),   # weights row
        ],
        out_specs=pl.BlockSpec(memory_space=pltpu.MemorySpace.VMEM),
        compiler_params=pltpu.CompilerParams(
            vmem_limit_bytes=_vmem_limit((1, C), (1, C))),
    )(x_scalar, row)


def _softmax_outer(col, row):
    """col: (R, 1), row: (1, C) -> (R, C) softmax over C (lane axis)."""
    R = col.shape[0]
    C = row.shape[1]
    # TODO(synk): for very large B (batch), tile C with a grid + online softmax
    # (resident m/s scratch, reduction axis last, "arbitrary") instead of the
    # whole-problem-resident design; irrelevant at matrix-game sizes.
    return pl.pallas_call(
        _softmax_outer_kernel,
        out_shape=jax.ShapeDtypeStruct((R, C), jnp.float32),
        in_specs=[
            pl.BlockSpec(memory_space=pltpu.MemorySpace.VMEM),
            pl.BlockSpec(memory_space=pltpu.MemorySpace.VMEM),
        ],
        out_specs=pl.BlockSpec(memory_space=pltpu.MemorySpace.VMEM),
        compiler_params=pltpu.CompilerParams(
            vmem_limit_bytes=_vmem_limit((R, 1), (1, C), (R, C))),
    )(col, row)


# ---------------------------------------------------------------------------
# Public forward (matches torch.softmax(self.logits(x), 0))
# ---------------------------------------------------------------------------

def matrix_game_strategy_forward(x, weight, *, lane_dense_output=False):
    """Pallas equivalent of MatrixGameStrategy.forward.

    Args:
      x: shape (1,) (canonical, as used by _update_distribution) or (B, 1).
      weight: weight of nn.Linear(1, n_actions, bias=False); shape (n_actions, 1)
        or (n_actions,).
      lane_dense_output: batched path only. If True, return the lane-dense
        (n_actions, B) layout the kernel produces (softmax axis on lanes) and let
        the consumer fuse the transpose, instead of materializing (B, n_actions).

    Returns (matching torch.softmax(logits, 0)):
      x (1,)   -> probs of shape (n_actions,)   (softmax over actions)
      x (B, 1) -> probs of shape (B, n_actions) (softmax over the batch dimension),
                  or (n_actions, B) if lane_dense_output=True.
    """
    w = jnp.asarray(weight, jnp.float32).reshape(-1)       # (n_actions,)
    n_actions = w.shape[0]
    x = jnp.asarray(x, jnp.float32)

    if x.ndim == 1:
        if x.shape[0] != 1:
            raise ValueError("1-D input must have shape (1,) since in_features == 1.")
        # logits[a] = x[0] * w[a]; softmax over the actions -> actions on the lane axis.
        # TODO(synk): if n_actions grows to hundreds (non-multiple of 128), pad the lane
        # axis to 128 inside the kernel with an iota mask and slice the prefix here.
        out = _softmax_row(x.reshape(1), w.reshape(1, n_actions))   # (1, n_actions)
        return out.reshape(n_actions)

    if x.ndim != 2 or x.shape[1] != 1:
        raise ValueError("2-D input must have shape (batch, 1).")
    # logits[b, a] = x[b, 0] * w[a]; softmax over dim 0 (batch) -> batch on the lane axis.
    batch = x.shape[0]
    out = _softmax_outer(w.reshape(n_actions, 1), x.reshape(1, batch))  # (n_actions, batch)
    if lane_dense_output:
        return out                                          # lane-dense, consumer fuses transpose
    return out.T                                            # layout plumbing only (torch shape)


def make_weights(key, n_actions, init_weights=None, init_weight_normalization=False):
    """Mirror MatrixGameStrategy.__init__ parameter setup.

    Torch default init for nn.Linear(1, n_actions): U(-1/sqrt(1), 1/sqrt(1)) = U(-1, 1).
    Returns weight of shape (n_actions, 1), same layout as the torch parameter.
    """
    if init_weights is not None:
        w = jnp.asarray(init_weights, jnp.float32).reshape(n_actions, 1)
        if init_weight_normalization:
            w = w / jnp.linalg.norm(w)
        return w
    return jax.random.uniform(key, (n_actions, 1), jnp.float32, minval=-1.0, maxval=1.0)


# TODO(synk): play()/_update_distribution draw Categorical samples with torch's host-side RNG;
# sampling is out of scope here -- only the forward pass (the probabilities) is a kernel.


def _reference_forward(x, weight):
    """Pure-JAX reference replicating torch: softmax(x @ W.T, dim=0)."""
    w = jnp.asarray(weight, jnp.float32).reshape(-1)
    x = jnp.asarray(x, jnp.float32)
    if x.ndim == 1:
        logits = x[0] * w                                  # (n_actions,)
    else:
        logits = x * w[None, :]                            # (B, n_actions)
    return jax.nn.softmax(logits, axis=0)                  # == torch.softmax(logits, 0)


if __name__ == "__main__":
    key = jax.random.PRNGKey(0)
    k_w, k_x = jax.random.split(key)

    n_actions = 4     # e.g. a 4-action matrix game
    batch = 8

    weight = make_weights(k_w, n_actions)                  # (n_actions, 1), like the torch parameter

    # Canonical use (MatrixGameStrategy._update_distribution): x = ones(1) -> mixed strategy.
    x1 = jnp.ones((1,), jnp.float32)
    probs1 = jax.block_until_ready(matrix_game_strategy_forward(x1, weight))
    ref1 = _reference_forward(x1, weight)
    assert probs1.shape == (n_actions,)
    assert jnp.allclose(jnp.sum(probs1), 1.0, atol=1e-6)
    assert jnp.allclose(probs1, ref1, atol=1e-6, rtol=1e-5), "1-D forward mismatch vs reference"

    # Batched 2-D input: torch semantics are softmax over dim 0 (the batch axis).
    x2 = jax.random.uniform(k_x, (batch, 1), jnp.float32)
    probs2 = jax.block_until_ready(matrix_game_strategy_forward(x2, weight))
    ref2 = _reference_forward(x2, weight)
    assert probs2.shape == (batch, n_actions)
    assert jnp.allclose(probs2, ref2, atol=1e-6, rtol=1e-5), "2-D forward mismatch vs reference"

    # Lane-dense variant (same numbers, transposed layout, no materialized transpose).
    probs2_ld = jax.block_until_ready(
        matrix_game_strategy_forward(x2, weight, lane_dense_output=True))
    assert probs2_ld.shape == (n_actions, batch)
    assert jnp.allclose(probs2_ld.T, ref2, atol=1e-6, rtol=1e-5), "lane-dense mismatch"

    print("KERNEL_OK")
</pallas_src>

<mosaic_0001>
module attributes {stable_mosaic.version = 11 : i64} {
  func.func @_softmax_scale_row_kernel(%arg0: memref<1xf32, #tpu.memory_space<smem>>, %arg1: memref<1x4xf32, #tpu.memory_space<vmem>>, %arg2: memref<1x4xf32, #tpu.memory_space<vmem>>) attributes {dimension_semantics = [], scalar_prefetch = 0 : i64, scratch_operands = 0 : i64, tpu.core_type = #tpu.core_type<tc>} {
    %c0 = arith.constant 0 : index
    %0 = memref.load %arg0[%c0] : memref<1xf32, #tpu.memory_space<smem>>
    %c0_0 = arith.constant 0 : index
    %c0_1 = arith.constant 0 : index
    %1 = vector.load %arg1[%c0_0, %c0_1] : memref<1x4xf32, #tpu.memory_space<vmem>>, vector<1x4xf32>
    %2 = vector.broadcast %0 : f32 to vector<1x4xf32>
    %3 = arith.mulf %1, %2 : vector<1x4xf32>
    %cst = arith.constant dense<0xFF800000> : vector<1xf32>
    %4 = vector.multi_reduction <maximumf>, %3, %cst [1] : vector<1x4xf32> to vector<1xf32>
    %5 = vector.shape_cast %4 : vector<1xf32> to vector<1x1xf32>
    %6 = vector.broadcast %5 : vector<1x1xf32> to vector<1x4xf32>
    %7 = arith.subf %3, %6 : vector<1x4xf32>
    %8 = math.exp %7 : vector<1x4xf32>
    %cst_2 = arith.constant dense<0.000000e+00> : vector<1xf32>
    %9 = vector.multi_reduction <add>, %8, %cst_2 [1] : vector<1x4xf32> to vector<1xf32>
    %10 = vector.shape_cast %9 : vector<1xf32> to vector<1x1xf32>
    %11 = tpu.reciprocal %10 : vector<1x1xf32> -> vector<1x1xf32>
    %12 = vector.broadcast %11 : vector<1x1xf32> to vector<1x4xf32>
    %13 = arith.mulf %8, %12 : vector<1x4xf32>
    %c0_3 = arith.constant 0 : index
    %c0_4 = arith.constant 0 : index
    %14 = vector.load %arg2[%c0_3, %c0_4] : memref<1x4xf32, #tpu.memory_space<vmem>>, vector<1x4xf32>
    tpu.vector_store %arg2[%c0_3, %c0_4], %13 {strides = array<i32>} : memref<1x4xf32, #tpu.memory_space<vmem>>, vector<1x4xf32>,
    return
  }
}

</mosaic_0001>

<llo_original>
// kernel: tpu_custom_call.1
$region0: #{tpu_custom_call.1}
  #allocation0 [shape = 'u32[]', space=smem, size = 0x4, offset = 0x4, fixed_abs, tag = 'smem constant byte address 0x4 - core index']
  #allocation1 [shape = 'u32[144,128]{1,0:T(1,128)}', space=vmem, size = 0x12000, scoped, tag = 'internal scratch']
  #allocation2 [shape = 'f32[1]{0:T(128)S(6)}', space=smem, size = 0x200, scoped, tag = 'scoped memory for tpu_custom_call.1']
  %s0 = inlined_call_operand.<no memory space> [shape: f32[1], index: 0, kind: input, shape index: {}]
  %s1 = inlined_call_operand.vmem [shape: f32[1,4], index: 1, kind: input, shape index: {}]
  %s2 = inlined_call_operand.hbm [shape: f32[1,4], index: 2, kind: output, shape index: {}]
  %s3 = sld [smem:[#allocation0]]
  $region18: #{tpu_custom_call.1} parent=0
    _
  %s5 = ssub.s32 1, %s3
  %s6 = scalar_select 0, %s5, %s3
  %7 = sst [smem:[#allocation2]] %s0
  $region1: #{tpu_custom_call.1} parent=0
    #allocation3 [shape = 'u8[512]{0}', space=vmem, size = 0x400, scoped, tag = 'output window, operand 0, single buffered']
    #allocation4 [shape = 's32[1]{0}', space=sflag, size = 0x4, scoped, tag = 'scoped memory for tpu_custom_call.1']
    %8 = vsyncpa [#allocation4], 0
    // Predicated region
    $region2: #{tpu_custom_call.1} parent=1 // pred_check
      _
    $region3: #{tpu_custom_call.1} parent=1 // pred_check_branch
      %10 = sbr.rel (0) target = $region5
    $region4: #{tpu_custom_call.1} parent=1 // pred_region
      _
    $region5: #{tpu_custom_call.1} parent=1 // pred_fallthru
      _
    // Predicated region
    $region6: #{tpu_custom_call.1} parent=1 // pred_check
      _
    $region7: #{tpu_custom_call.1} parent=1 // pred_check_branch
      %12 = sbr.rel (0) target = $region9
    $region8: #{tpu_custom_call.1} parent=1 // pred_region
      _
    $region9: #{tpu_custom_call.1} parent=1 // pred_fallthru
      _
    %s13 = sld [smem:[#allocation2]]
    %v14 = vld [vmem:[%s1] sm:$0x1]
    %v15 = vstv %s13
    %v16 = vmul.f32 %v14, %v15
    %vm17 = vcmask 24576
    %v18 = vsel %vm17, %v16, -inf
    %19 = vmax.xlane.f32.xlu0 %v18
    %v20 = vpop.xlane.xlu0 %19
    %v21 = vsub.f32 %v16, %v20
    %v22 = vmul.f32 %v21, 1.442695
    %v23 = vpow.pop %v22
    %v24 = vsel %vm17, %v23, 0.0
    %25 = vadd.xlane.f32.xlu0 %v24
    %v26 = vpop.xlane.xlu0 %25
    %v27 = vrcp.pop %v26
    %v28 = vmul.f32 %v23, %v27
    %29 = vst.msk [vmem:[#allocation3] sm:$0x1] %vm17, %v28
    // Predicated region
    $region10: #{tpu_custom_call.1} parent=1 // pred_check
      _
    $region11: #{tpu_custom_call.1} parent=1 // pred_check_branch
      %31 = sbr.rel (0) target = $region13
    $region12: #{tpu_custom_call.1} parent=1 // pred_region
      %s33 = ssub.s32 16, 16
      %34 = vsyncadd [#allocation4], %s33
      %s36 = sshll.u32 [#allocation3], 4
      %s37 = int_to_ptr.vmem [resolvable:$true] %s36
      %39 = dma.vmem_to_hbm [thread:$0]  %s37, 16, %s2, [#allocation4]
    $region13: #{tpu_custom_call.1} parent=1 // pred_fallthru
      _
    // Predicated region
    $region14: #{tpu_custom_call.1} parent=1 // pred_check
      _
    $region15: #{tpu_custom_call.1} parent=1 // pred_check_branch
      %41 = sbr.rel (0) target = $region17
    $region16: #{tpu_custom_call.1} parent=1 // pred_region
      %42 = dma.done [#allocation4], 16
    $region17: #{tpu_custom_call.1} parent=1 // pred_fallthru
      _
    %43 = vsyncpa [#allocation4], 1

</llo_original>
